<compile_context>
chip_gen: v7x
topology: tpu7x:2x2x1
jax: 0.10.0
libtpu: 0.0.40
codegen_flags: <defaults>
</compile_context>

<pallas_src>
import functools

import jax
import jax.numpy as jnp
from jax.experimental import pallas as pl
from jax.experimental.pallas import tpu as pltpu


def _label_smoothing_kernel(pred_ref, tgt_ref, out_ref, *, confidence, smooth_val,
                            num_classes, batch, block_b):
    # pred_ref: (TB, C_pad) in VMEM ; tgt_ref: (TB, 1) int32 in VMEM
    # out_ref : (1, 1) f32 in VMEM, resident across the whole grid (accumulator)
    i = pl.program_id(0)

    @pl.when(i == 0)
    def _init():
        out_ref[...] = jnp.zeros_like(out_ref)

    pred = pred_ref[...].astype(jnp.float32)                 # (TB, Cp)
    tb, cp = pred.shape

    col = jax.lax.broadcasted_iota(jnp.int32, (tb, cp), 1)   # global class index
    col_valid = col < num_classes

    neg_big = jnp.float32(-1e30)
    x = jnp.where(col_valid, pred, neg_big)                  # mask padded classes

    # --- numerically stable logsumexp over valid classes ---
    row_max = jnp.max(x, axis=-1, keepdims=True)             # (TB, 1)
    shifted = x - row_max
    sum_exp = jnp.sum(jnp.where(col_valid, jnp.exp(shifted), 0.0),
                      axis=-1, keepdims=True)
    lse = jnp.log(sum_exp)                                   # (TB, 1)

    # --- algebraic smoothed loss (no materialized true_dist) ---
    tgt = tgt_ref[...]                                       # (TB, 1) int32
    one_hot = col == tgt
    shifted_tgt = jnp.sum(jnp.where(one_hot, shifted, 0.0),
                          axis=-1, keepdims=True)            # shifted[target]
    sum_shifted = jnp.sum(jnp.where(col_valid, shifted, 0.0),
                          axis=-1, keepdims=True)            # sum_c(shifted)

    log_p_tgt = shifted_tgt - lse                            # log_probs[target]
    sum_log_p = sum_shifted - jnp.float32(num_classes) * lse # sum_c(log_probs)

    per_row = (-(confidence - smooth_val)) * log_p_tgt - smooth_val * sum_log_p

    # mask rows that are batch padding
    row = jax.lax.broadcasted_iota(jnp.int32, (tb, 1), 0) + i * block_b
    per_row = jnp.where(row < batch, per_row, 0.0)

    out_ref[...] += jnp.sum(per_row, axis=0, keepdims=True)  # partial sum

    @pl.when(i == pl.num_programs(0) - 1)
    def _finalize():
        out_ref[...] = out_ref[...] * jnp.float32(1.0 / batch)


def label_smoothing_loss(pred, target, *, num_classes, smoothing=0.1, block_b=None):
    """Pallas equivalent of LabelSmoothingLoss.forward(pred, target).

    pred may be float32 or bfloat16 (cast to f32 inside the kernel).
    """
    confidence = 1.0 - smoothing
    smooth_val = smoothing / (num_classes - 1)

    B, C = pred.shape
    assert C == num_classes

    itemsize = jnp.dtype(pred.dtype).itemsize
    # lane-dense class dim: pad to a multiple of 128
    C_pad = max(128, ((C + 127) // 128) * 128)

    # pick a batch tile: ~4 MiB of pred per tile buffer, multiple of 8,
    # never larger than the (rounded-up) batch itself.
    if block_b is None:
        bytes_per_row = C_pad * itemsize
        block_b = max(8, min(1024, (4 * 1024 * 1024) // max(1, bytes_per_row)))
    block_b = max(8, (block_b // 8) * 8)
    b_ceil = ((B + 7) // 8) * 8
    block_b = min(block_b, b_ceil)

    B_pad = -(-B // block_b) * block_b
    grid = (B_pad // block_b,)

    pred_p = jnp.pad(pred, ((0, B_pad - B), (0, C_pad - C)))
    tgt_p = jnp.pad(target.astype(jnp.int32), (0, B_pad - B)).reshape(B_pad, 1)

    kernel = functools.partial(
        _label_smoothing_kernel,
        confidence=float(confidence),
        smooth_val=float(smooth_val),
        num_classes=int(num_classes),
        batch=int(B),
        block_b=int(block_b),
    )

    cost = pl.CostEstimate(
        flops=int(8 * B_pad * C_pad),
        transcendentals=int(B_pad * C_pad + 2 * B_pad),
        bytes_accessed=int(B_pad * C_pad * itemsize + B_pad * 4 + 4),
    )

    out = pl.pallas_call(
        kernel,
        out_shape=jax.ShapeDtypeStruct((1, 1), jnp.float32),
        grid_spec=pltpu.PrefetchScalarGridSpec(
            num_scalar_prefetch=0,
            grid=grid,
            in_specs=[
                pl.BlockSpec((block_b, C_pad), lambda i: (i, 0)),  # pred tile
                pl.BlockSpec((block_b, 1), lambda i: (i, 0)),      # target tile
            ],
            out_specs=pl.BlockSpec((1, 1), lambda i: (0, 0)),      # resident scalar
        ),
        compiler_params=pltpu.CompilerParams(
            dimension_semantics=("arbitrary",),      # reduction over batch tiles
            vmem_limit_bytes=32 * 1024 * 1024,
        ),
        cost_estimate=cost,
    )(pred_p, tgt_p)
    return out[0, 0]


def _reference(pred, target, *, num_classes, smoothing=0.1):
    confidence = 1.0 - smoothing
    log_probs = jax.nn.log_softmax(pred.astype(jnp.float32), axis=-1)
    smooth_val = smoothing / (num_classes - 1)
    true_dist = jnp.full_like(log_probs, smooth_val)
    true_dist = true_dist.at[jnp.arange(pred.shape[0]), target].set(confidence)
    return jnp.mean(jnp.sum(-true_dist * log_probs, axis=-1))


if __name__ == "__main__":
    key = jax.random.PRNGKey(0)
    k1, k2, k3, k4 = jax.random.split(key, 4)

    # Case 1: small demo shape consistent with the module (batch, num_classes)
    batch, num_classes, smoothing = 8, 10, 0.1
    pred = jax.random.normal(k1, (batch, num_classes), dtype=jnp.float32)
    target = jax.random.randint(k2, (batch,), 0, num_classes, dtype=jnp.int32)

    loss = label_smoothing_loss(pred, target, num_classes=num_classes,
                                smoothing=smoothing)
    jax.block_until_ready(loss)
    ref = _reference(pred, target, num_classes=num_classes, smoothing=smoothing)
    assert jnp.allclose(loss, ref, rtol=1e-5, atol=1e-5), (loss, ref)

    # Case 2: exercises multi-tile grid + padded-row masking (B not multiple of tile)
    batch2 = 300
    pred2 = jax.random.normal(k3, (batch2, num_classes), dtype=jnp.float32)
    target2 = jax.random.randint(k4, (batch2,), 0, num_classes, dtype=jnp.int32)
    loss2 = label_smoothing_loss(pred2, target2, num_classes=num_classes,
                                 smoothing=smoothing, block_b=128)
    jax.block_until_ready(loss2)
    ref2 = _reference(pred2, target2, num_classes=num_classes, smoothing=smoothing)
    assert jnp.allclose(loss2, ref2, rtol=1e-5, atol=1e-5), (loss2, ref2)

    print("KERNEL_OK")
</pallas_src>

<mosaic_0001>
module attributes {stable_mosaic.version = 11 : i64} {
  func.func @_label_smoothing_kernel(%arg0: i32, %arg1: memref<8x128xf32, #tpu.memory_space<vmem>>, %arg2: memref<8x1xi32, #tpu.memory_space<vmem>>, %arg3: memref<1x1xf32, #tpu.memory_space<vmem>>) attributes {dimension_semantics = [#tpu.dimension_semantics<arbitrary>], iteration_bounds = array<i64: 1>, scalar_prefetch = 0 : i64, scratch_operands = 0 : i64, tpu.core_type = #tpu.core_type<tc>, window_params = [{transform_indices = @transform_0, window_bounds = array<i64: 8, 128>}, {transform_indices = @transform_1, window_bounds = array<i64: 8, 1>}, {pipeline_mode = #tpu.pipeline_mode<synchronous>, transform_indices = @transform_2, window_bounds = array<i64: 1, 1>}]} {
    %c0_i32 = arith.constant 0 : i32
    %0 = arith.cmpi eq, %arg0, %c0_i32 : i32
    %1 = arith.extui %0 : i1 to i32
    %c0_i32_0 = arith.constant 0 : i32
    %2 = arith.cmpi ne, %1, %c0_i32_0 : i32
    scf.if %2 {
      %cst_23 = arith.constant 0.000000e+00 : f32
      %55 = vector.broadcast %cst_23 : f32 to vector<1x1xf32>
      %c0_24 = arith.constant 0 : index
      %c0_25 = arith.constant 0 : index
      %56 = vector.load %arg3[%c0_24, %c0_25] : memref<1x1xf32, #tpu.memory_space<vmem>>, vector<1x1xf32>
      tpu.vector_store %arg3[%c0_24, %c0_25], %55 {strides = array<i32>} : memref<1x1xf32, #tpu.memory_space<vmem>>, vector<1x1xf32>,
    } else {
    }
    %c0 = arith.constant 0 : index
    %c0_1 = arith.constant 0 : index
    %3 = vector.load %arg1[%c0, %c0_1] : memref<8x128xf32, #tpu.memory_space<vmem>>, vector<8x128xf32>
    %4 = tpu.iota {dimensions = array<i32: 1>} : vector<8x128xi32>
    %c10_i32 = arith.constant 10 : i32
    %5 = vector.broadcast %c10_i32 : i32 to vector<8x128xi32>
    %6 = arith.cmpi slt, %4, %5 : vector<8x128xi32>
    %cst = arith.constant -1.000000e+30 : f32
    %7 = vector.broadcast %cst : f32 to vector<8x128xf32>
    %8 = arith.select %6, %3, %7 : vector<8x128xi1>, vector<8x128xf32>
    %cst_2 = arith.constant dense<0xFF800000> : vector<8xf32>
    %9 = vector.multi_reduction <maximumf>, %8, %cst_2 [1] : vector<8x128xf32> to vector<8xf32>
    %10 = vector.shape_cast %9 : vector<8xf32> to vector<8x1xf32>
    %11 = vector.broadcast %10 : vector<8x1xf32> to vector<8x128xf32>
    %12 = arith.subf %8, %11 : vector<8x128xf32>
    %13 = math.exp %12 : vector<8x128xf32>
    %cst_3 = arith.constant 0.000000e+00 : f32
    %14 = vector.broadcast %cst_3 : f32 to vector<8x128xf32>
    %15 = arith.select %6, %13, %14 : vector<8x128xi1>, vector<8x128xf32>
    %cst_4 = arith.constant dense<0.000000e+00> : vector<8xf32>
    %16 = vector.multi_reduction <add>, %15, %cst_4 [1] : vector<8x128xf32> to vector<8xf32>
    %17 = vector.shape_cast %16 : vector<8xf32> to vector<8x1xf32>
    %18 = math.log %17 : vector<8x1xf32>
    %c0_5 = arith.constant 0 : index
    %c0_6 = arith.constant 0 : index
    %19 = vector.load %arg2[%c0_5, %c0_6] : memref<8x1xi32, #tpu.memory_space<vmem>>, vector<8x1xi32>
    %20 = vector.broadcast %19 : vector<8x1xi32> to vector<8x128xi32>
    %21 = arith.cmpi eq, %4, %20 : vector<8x128xi32>
    %cst_7 = arith.constant 0.000000e+00 : f32
    %22 = vector.broadcast %cst_7 : f32 to vector<8x128xf32>
    %23 = arith.select %21, %12, %22 : vector<8x128xi1>, vector<8x128xf32>
    %cst_8 = arith.constant dense<0.000000e+00> : vector<8xf32>
    %24 = vector.multi_reduction <add>, %23, %cst_8 [1] : vector<8x128xf32> to vector<8xf32>
    %25 = vector.shape_cast %24 : vector<8xf32> to vector<8x1xf32>
    %cst_9 = arith.constant 0.000000e+00 : f32
    %26 = vector.broadcast %cst_9 : f32 to vector<8x128xf32>
    %27 = arith.select %6, %12, %26 : vector<8x128xi1>, vector<8x128xf32>
    %cst_10 = arith.constant dense<0.000000e+00> : vector<8xf32>
    %28 = vector.multi_reduction <add>, %27, %cst_10 [1] : vector<8x128xf32> to vector<8xf32>
    %29 = vector.shape_cast %28 : vector<8xf32> to vector<8x1xf32>
    %30 = arith.subf %25, %18 : vector<8x1xf32>
    %cst_11 = arith.constant 1.000000e+01 : f32
    %31 = vector.broadcast %cst_11 : f32 to vector<8x1xf32>
    %32 = arith.mulf %31, %18 : vector<8x1xf32>
    %33 = arith.subf %29, %32 : vector<8x1xf32>
    %cst_12 = arith.constant -0.888888895 : f32
    %34 = vector.broadcast %cst_12 : f32 to vector<8x1xf32>
    %35 = arith.mulf %34, %30 : vector<8x1xf32>
    %cst_13 = arith.constant 0.0111111114 : f32
    %36 = vector.broadcast %cst_13 : f32 to vector<8x1xf32>
    %37 = arith.mulf %36, %33 : vector<8x1xf32>
    %38 = arith.subf %35, %37 : vector<8x1xf32>
    %39 = tpu.iota {dimensions = array<i32: 0>} : vector<8x1xi32>
    %c8_i32 = arith.constant 8 : i32
    %40 = arith.muli %arg0, %c8_i32 : i32
    %41 = vector.broadcast %40 : i32 to vector<8x1xi32>
    %42 = arith.addi %39, %41 : vector<8x1xi32>
    %c8_i32_14 = arith.constant 8 : i32
    %43 = vector.broadcast %c8_i32_14 : i32 to vector<8x1xi32>
    %44 = arith.cmpi slt, %42, %43 : vector<8x1xi32>
    %cst_15 = arith.constant 0.000000e+00 : f32
    %45 = vector.broadcast %cst_15 : f32 to vector<8x1xf32>
    %46 = arith.select %44, %38, %45 : vector<8x1xi1>, vector<8x1xf32>
    %c0_16 = arith.constant 0 : index
    %c0_17 = arith.constant 0 : index
    %47 = vector.load %arg3[%c0_16, %c0_17] : memref<1x1xf32, #tpu.memory_space<vmem>>, vector<1x1xf32>
    %cst_18 = arith.constant dense<0.000000e+00> : vector<1xf32>
    %48 = vector.multi_reduction <add>, %46, %cst_18 [0] : vector<8x1xf32> to vector<1xf32>
    %49 = vector.shape_cast %48 : vector<1xf32> to vector<1x1xf32>
    %50 = arith.addf %47, %49 : vector<1x1xf32>
    %c0_19 = arith.constant 0 : index
    %c0_20 = arith.constant 0 : index
    %51 = vector.load %arg3[%c0_19, %c0_20] : memref<1x1xf32, #tpu.memory_space<vmem>>, vector<1x1xf32>
    tpu.vector_store %arg3[%c0_19, %c0_20], %50 {strides = array<i32>} : memref<1x1xf32, #tpu.memory_space<vmem>>, vector<1x1xf32>,
    %c0_i32_21 = arith.constant 0 : i32
    %52 = arith.cmpi eq, %arg0, %c0_i32_21 : i32
    %53 = arith.extui %52 : i1 to i32
    %c0_i32_22 = arith.constant 0 : i32
    %54 = arith.cmpi ne, %53, %c0_i32_22 : i32
    scf.if %54 {
      %c0_23 = arith.constant 0 : index
      %c0_24 = arith.constant 0 : index
      %55 = vector.load %arg3[%c0_23, %c0_24] : memref<1x1xf32, #tpu.memory_space<vmem>>, vector<1x1xf32>
      %cst_25 = arith.constant 1.250000e-01 : f32
      %56 = vector.broadcast %cst_25 : f32 to vector<1x1xf32>
      %57 = arith.mulf %55, %56 : vector<1x1xf32>
      %c0_26 = arith.constant 0 : index
      %c0_27 = arith.constant 0 : index
      %58 = vector.load %arg3[%c0_26, %c0_27] : memref<1x1xf32, #tpu.memory_space<vmem>>, vector<1x1xf32>
      tpu.vector_store %arg3[%c0_26, %c0_27], %57 {strides = array<i32>} : memref<1x1xf32, #tpu.memory_space<vmem>>, vector<1x1xf32>,
    } else {
    }
    return
  }
  func.func @transform_0(%arg0: i32) -> (i32, i32) {
    %c0_i32 = arith.constant 0 : i32
    %c0_i32_0 = arith.constant 0 : i32
    return %arg0, %c0_i32 : i32, i32
  }
  func.func @transform_1(%arg0: i32) -> (i32, i32) {
    %c0_i32 = arith.constant 0 : i32
    %c0_i32_0 = arith.constant 0 : i32
    return %arg0, %c0_i32 : i32, i32
  }
  func.func @transform_2(%arg0: i32) -> (i32, i32) {
    %c0_i32 = arith.constant 0 : i32
    %c0_i32_0 = arith.constant 0 : i32
    %c0_i32_1 = arith.constant 0 : i32
    return %c0_i32, %c0_i32_0 : i32, i32
  }
}

</mosaic_0001>

<llo_original>
// kernel: tpu_custom_call.1
$region0: #{tpu_custom_call.1}
  #allocation0 [shape = 'u32[]', space=smem, size = 0x4, offset = 0x4, fixed_abs, tag = 'smem constant byte address 0x4 - core index']
  #allocation1 [shape = 'u32[144,128]{1,0:T(1,128)}', space=vmem, size = 0x12000, scoped, tag = 'internal scratch']
  %s0 = inlined_call_operand.vmem [shape: f32[8,128], index: 0, kind: input, shape index: {}]
  %s1 = inlined_call_operand.vmem [shape: s32[8,1], index: 1, kind: input, shape index: {}]
  %s2 = inlined_call_operand.hbm [shape: f32[1,1], index: 2, kind: output, shape index: {}]
  %s3 = sld [smem:[#allocation0]]
  $region26: #{tpu_custom_call.1} parent=0
    _
  %s5 = ssub.s32 1, %s3
  %s6 = scalar_select 0, %s5, %s3
  $region1: #{tpu_custom_call.1} parent=0
    #allocation2 [shape = 'u8[512]{0}', space=vmem, size = 0x400, scoped, tag = 'output window, operand 0, single buffered']
    #allocation3 [shape = 's32[1]{0}', space=sflag, size = 0x4, scoped, tag = 'scoped memory for tpu_custom_call.1']
    %7 = vsyncpa [#allocation3], 0
    // Predicated region
    $region2: #{tpu_custom_call.1} parent=1 // pred_check
      _
    $region3: #{tpu_custom_call.1} parent=1 // pred_check_branch
      %9 = sbr.rel (0) target = $region5
    $region4: #{tpu_custom_call.1} parent=1 // pred_region
      _
    $region5: #{tpu_custom_call.1} parent=1 // pred_fallthru
      _
    // Predicated region
    $region6: #{tpu_custom_call.1} parent=1 // pred_check
      _
    $region7: #{tpu_custom_call.1} parent=1 // pred_check_branch
      %11 = sbr.rel (0) target = $region9
    $region8: #{tpu_custom_call.1} parent=1 // pred_region
      _
    $region9: #{tpu_custom_call.1} parent=1 // pred_fallthru
      _
    %p12 = scmp.eq.s32.totalorder 0, 0
    // Predicated region
    $region10: #{tpu_custom_call.1} parent=1 // pred_check
      %p13 = pneg %p12
    $region11: #{tpu_custom_call.1} parent=1 // pred_check_branch
      %15 = sbr.rel (%p13) target = $region13
    $region12: #{tpu_custom_call.1} parent=1 // pred_region
      %vm16 = vcmask 0
      %17 = vst.msk [vmem:[#allocation2] sm:$0x1] %vm16, 0.0
    $region13: #{tpu_custom_call.1} parent=1 // pred_fallthru
      _
    %v18 = vld [vmem:[%s0] sm:$0xff]
    %v19 = vlaneseq
    %v20 = vand.u32 %v19, 127
    %vm21 = vcmp.lt.s32.totalorder %v20, 10
    %v22 = vsel %vm21, %v18, -1e+30
    %23 = vmax.xlane.f32.xlu0 %v22
    %v24 = vpop.xlane.xlu0 %23
    %v25 = vsub.f32 %v22, %v24
    %v26 = vmul.f32 %v25, 1.442695
    %v27 = vpow.pop %v26
    %v28 = vsel %vm21, %v27, 0.0
    %29 = vadd.xlane.f32.xlu0 %v28
    %v30 = vpop.xlane.xlu0 %29
    %v31 = vlog2.pop %v30
    %v32 = vmul.f32 %v31, 0.6931472
    %v33 = vld [vmem:[%s1] sm:$0xff]
    %34 = vset.pattern.permute.xlu0 0
    %35 = vperm.xlu0 %34, %v33
    %v36 = vpop.permute.xlu0 %35
    %vm37 = vcmp.eq.s32.totalorder %v20, %v36
    %v38 = vsel %vm37, %v25, 0.0
    %39 = vadd.xlane.f32.xlu0 %v38
    %v40 = vpop.xlane.xlu0 %39
    %v41 = vsel %vm21, %v25, 0.0
    %42 = vadd.xlane.f32.xlu0 %v41
    %v43 = vpop.xlane.xlu0 %42
    %v44 = vsub.f32 %v40, %v32
    %v45 = vmul.f32 %v32, 10.0
    %v46 = vsub.f32 %v43, %v45
    %v47 = vmul.f32 %v44, -0.8888889
    %v48 = vmul.f32 %v46, 0.011111111
    %v49 = vsub.f32 %v47, %v48
    %v50 = vlaneseq
    %v51 = vshrl.u32 %v50, 7
    %s52 = smul.u32 0, 8
    %v53 = vstv %s52
    %v54 = vadd.s32 %v51, %v53
    %vm55 = vcmp.lt.s32.totalorder %v54, 8
    %v56 = vsel %vm55, %v49, 0.0
    %v57 = vld [vmem:[#allocation2] sm:$0x1]
    %v58 = vrot.slane %v56, 4
    %v59 = vadd.f32 %v56, %v58
    %v60 = vrot.slane %v59, 2
    %v61 = vadd.f32 %v59, %v60
    %v62 = vrot.slane %v61, 1
    %v63 = vadd.f32 %v61, %v62
    %v64 = vadd.f32 %v57, %v63
    %vm65 = vcmask 0
    %66 = vst.msk [vmem:[#allocation2] sm:$0x1] %vm65, %v64
    // Predicated region
    $region14: #{tpu_custom_call.1} parent=1 // pred_check
      %p67 = pneg %p12
    $region15: #{tpu_custom_call.1} parent=1 // pred_check_branch
      %69 = sbr.rel (%p67) target = $region17
    $region16: #{tpu_custom_call.1} parent=1 // pred_region
      %v70 = vld [vmem:[#allocation2] sm:$0x1]
      %v71 = vmul.f32 %v70, 0.125
      %72 = vst.msk [vmem:[#allocation2] sm:$0x1] %vm65, %v71
    $region17: #{tpu_custom_call.1} parent=1 // pred_fallthru
      _
    // Predicated region
    $region18: #{tpu_custom_call.1} parent=1 // pred_check
      _
    $region19: #{tpu_custom_call.1} parent=1 // pred_check_branch
      %74 = sbr.rel (0) target = $region21
    $region20: #{tpu_custom_call.1} parent=1 // pred_region
      %s76 = ssub.s32 16, 16
      %77 = vsyncadd [#allocation3], %s76
      %s79 = sshll.u32 [#allocation2], 4
      %s80 = int_to_ptr.vmem [resolvable:$true] %s79
      %82 = dma.vmem_to_hbm [thread:$0]  %s80, 16, %s2, [#allocation3]
    $region21: #{tpu_custom_call.1} parent=1 // pred_fallthru
      _
    // Predicated region
    $region22: #{tpu_custom_call.1} parent=1 // pred_check
      _
    $region23: #{tpu_custom_call.1} parent=1 // pred_check_branch
      %84 = sbr.rel (0) target = $region25
    $region24: #{tpu_custom_call.1} parent=1 // pred_region
      %85 = dma.done [#allocation3], 16
    $region25: #{tpu_custom_call.1} parent=1 // pred_fallthru
      _
    %86 = vsyncpa [#allocation3], 1

</llo_original>
